<compile_context>
chip_gen: v6e
topology: v6e:2x2x1
jax: 0.10.0
libtpu: 0.0.40
codegen_flags: <defaults>
</compile_context>

<pallas_src>
import functools

import jax
import jax.numpy as jnp
from jax.experimental import pallas as pl
from jax.experimental.pallas import tpu as pltpu


_LANES = 128


# ------------------------------- planning ----------------------------------- #

def _round_up(x, m):
    return (x + m - 1) // m * m


def _round_down(x, m):
    return x // m * m


def _padded_rows(rows, dtype):
    # VMEM tiles pad the second-to-last dim to the sublane tiling:
    # 8 rows for 32-bit, 16 for 16-bit, 32 for 8-bit element types.
    packing = max(1, 4 // jnp.dtype(dtype).itemsize)
    return _round_up(rows, 8 * packing)


def _plan(hw, c, x_dtype, mask_dtype, batch, tile=None, split=None):
    """Pick (tile, P, n_t, n_blocks, vmem_limit_bytes) for the streaming grid.

    tile : lane width of one HW block (multiple of 128, or == hw if hw < 128).
    P    : parallel split of the HW-block range (megacore help at small B).
    n_t  : blocks per split ("arbitrary" reduction axis length).
    """
    x_isz = jnp.dtype(x_dtype).itemsize
    # VMEM bytes per lane of tile width: double-buffered x1/x2 (+mask) blocks
    # plus the f32 accumulators, including sublane padding when C < 8.
    per_lane = 2 * 2 * _padded_rows(c, x_dtype) * x_isz              # x1, x2
    per_lane += _padded_rows(c, jnp.float32) * 4                     # acc_num
    if mask_dtype is not None:
        m_isz = jnp.dtype(mask_dtype).itemsize
        per_lane += 2 * _padded_rows(1, mask_dtype) * m_isz          # mask
        per_lane += _padded_rows(1, jnp.float32) * 4                 # acc_den

    if tile is None:
        budget = 20 * 1024 * 1024            # conservative for v7x (64 MiB VMEM)
        t_budget = _round_down(budget // per_lane, _LANES)
        t_block = _round_down((2 * 1024 * 1024) // max(1, c * x_isz), _LANES)
        tile = min(t_budget, t_block)
    tile = max(_LANES, _round_up(tile, _LANES))
    if hw >= _LANES:
        # Keep the block no wider than the array (ragged *final* blocks are the
        # standard supported case); for tiny HW use a single full-width block.
        tile = max(_LANES, min(tile, _round_down(hw, _LANES)))
    else:
        tile = hw

    n_blocks = -(-hw // tile)
    if split is None:
        split = 2 if batch < 4 else 1        # feed both v7x TensorCores at tiny B
    p = max(1, min(split, n_blocks))
    n_t = -(-n_blocks // p)

    est = per_lane * tile + 64 * 1024        # + double-buffered (8,128) outputs
    vmem_limit = min(48 * 1024 * 1024, max(int(1.3 * est), 32 * 1024 * 1024))
    return tile, p, n_t, n_blocks, vmem_limit


# ----------------------------- Pallas kernels -------------------------------- #

def _masked_mse_kernel(x1_ref, x2_ref, m_ref, num_ref, den_ref,
                       acc_num, acc_den, *, hw, tile, n_t):
    # x1_ref, x2_ref: (C, tile)   m_ref: (1, tile)
    # num_ref, den_ref: (1, 1, 8, 128) per-(batch, split) partial outputs
    # acc_num: (C, tile) f32 scratch   acc_den: (1, tile) f32 scratch
    p = pl.program_id(1)
    t = pl.program_id(2)

    @pl.when(t == 0)
    def _():
        acc_num[...] = jnp.zeros_like(acc_num)
        acc_den[...] = jnp.zeros_like(acc_den)

    # Ragged-tile / out-of-range handling (replaces wrapper-side jnp.pad):
    # lanes whose global flattened-HW offset is >= hw contribute exactly 0.
    # Using the *unclamped* block index also zeroes any fully out-of-range
    # block the megacore split maps onto (its DMA index is clamped in-bounds
    # by the index_map).  jnp.where (not multiply) keeps garbage NaNs out.
    blk = p * n_t + t
    off = blk * tile + jax.lax.broadcasted_iota(jnp.int32, (1, tile), 1)
    valid = off < hw                                                # (1, tile)

    d = x1_ref[...].astype(jnp.float32) - x2_ref[...].astype(jnp.float32)
    m = jnp.where(valid, m_ref[...].astype(jnp.float32), 0.0)      # (1, tile)
    acc_num[...] += jnp.where(valid, d * d * m, 0.0)               # VPU-only
    acc_den[...] += m

    @pl.when(t == pl.num_programs(2) - 1)
    def _():
        # Once per (batch, split): cross-vreg VALU adds + one in-vreg XLU
        # reduce (~1/n_t of the streamed work, hidden under the HBM pipeline).
        # Lane-dense (8,128) broadcast store; the wrapper picks [0, 0].
        num_ref[...] = jnp.full(num_ref.shape, jnp.sum(acc_num[...]),
                                jnp.float32)
        den_ref[...] = jnp.full(den_ref.shape, jnp.sum(acc_den[...]),
                                jnp.float32)


def _plain_mse_kernel(x1_ref, x2_ref, num_ref, acc_num, *, hw, tile, n_t):
    # Maskless variant for mask_type == 0: no ones-mask DMA stream.
    p = pl.program_id(1)
    t = pl.program_id(2)

    @pl.when(t == 0)
    def _():
        acc_num[...] = jnp.zeros_like(acc_num)

    blk = p * n_t + t
    off = blk * tile + jax.lax.broadcasted_iota(jnp.int32, (1, tile), 1)
    valid = off < hw

    d = x1_ref[...].astype(jnp.float32) - x2_ref[...].astype(jnp.float32)
    acc_num[...] += jnp.where(valid, d * d, 0.0)

    @pl.when(t == pl.num_programs(2) - 1)
    def _():
        num_ref[...] = jnp.full(num_ref.shape, jnp.sum(acc_num[...]),
                                jnp.float32)


# ---------------------------- pallas wrappers -------------------------------- #

def _masked_sums(x1, x2, mask_b1hw, *, tile=None, split=None):
    """Return (sum((x1-x2)^2 * mask), sum(mask)); mask broadcast over C."""
    B, C, H, W = x1.shape
    HW = H * W
    tile, P, n_t, n_blocks, vmem_limit = _plan(
        HW, C, x1.dtype, mask_b1hw.dtype, B, tile=tile, split=split)

    x1f = x1.reshape(B, C, HW)      # free (row-major collapse) reshapes
    x2f = x2.reshape(B, C, HW)
    mf = mask_b1hw.reshape(B, 1, HW)

    def data_map(b, p, t):
        # Clamp so the DMA stays in bounds; the kernel masks clamped/duplicate
        # blocks to zero via the unclamped offset test.
        return (b, 0, jnp.minimum(p * n_t + t, n_blocks - 1))

    out_map = lambda b, p, t: (b, p, 0, 0)
    kern = functools.partial(_masked_mse_kernel, hw=HW, tile=tile, n_t=n_t)

    num_p, den_p = pl.pallas_call(
        kern,
        out_shape=(jax.ShapeDtypeStruct((B, P, 8, _LANES), jnp.float32),
                   jax.ShapeDtypeStruct((B, P, 8, _LANES), jnp.float32)),
        grid_spec=pltpu.PrefetchScalarGridSpec(
            num_scalar_prefetch=0,
            grid=(B, P, n_t),
            in_specs=[
                pl.BlockSpec((pl.Squeezed(), C, tile), data_map),
                pl.BlockSpec((pl.Squeezed(), C, tile), data_map),
                pl.BlockSpec((pl.Squeezed(), 1, tile), data_map),
            ],
            out_specs=(pl.BlockSpec((1, 1, 8, _LANES), out_map),
                       pl.BlockSpec((1, 1, 8, _LANES), out_map)),
            scratch_shapes=[pltpu.VMEM((C, tile), jnp.float32),
                            pltpu.VMEM((1, tile), jnp.float32)],
        ),
        compiler_params=pltpu.CompilerParams(
            dimension_semantics=("parallel", "parallel", "arbitrary"),
            vmem_limit_bytes=vmem_limit),
    )(x1f, x2f, mf)

    return jnp.sum(num_p[:, :, 0, 0]), jnp.sum(den_p[:, :, 0, 0])


def _plain_sum_sq(x1, x2, *, tile=None, split=None):
    """Return sum((x1-x2)^2) (no mask stream)."""
    B, C, H, W = x1.shape
    HW = H * W
    tile, P, n_t, n_blocks, vmem_limit = _plan(
        HW, C, x1.dtype, None, B, tile=tile, split=split)

    x1f = x1.reshape(B, C, HW)
    x2f = x2.reshape(B, C, HW)

    def data_map(b, p, t):
        return (b, 0, jnp.minimum(p * n_t + t, n_blocks - 1))

    kern = functools.partial(_plain_mse_kernel, hw=HW, tile=tile, n_t=n_t)

    num_p = pl.pallas_call(
        kern,
        out_shape=jax.ShapeDtypeStruct((B, P, 8, _LANES), jnp.float32),
        grid_spec=pltpu.PrefetchScalarGridSpec(
            num_scalar_prefetch=0,
            grid=(B, P, n_t),
            in_specs=[
                pl.BlockSpec((pl.Squeezed(), C, tile), data_map),
                pl.BlockSpec((pl.Squeezed(), C, tile), data_map),
            ],
            out_specs=pl.BlockSpec((1, 1, 8, _LANES),
                                   lambda b, p, t: (b, p, 0, 0)),
            scratch_shapes=[pltpu.VMEM((C, tile), jnp.float32)],
        ),
        compiler_params=pltpu.CompilerParams(
            dimension_semantics=("parallel", "parallel", "arbitrary"),
            vmem_limit_bytes=vmem_limit),
    )(x1f, x2f)

    return jnp.sum(num_p[:, :, 0, 0])


# -------------------------- interpolation (glue) ----------------------------- #

def _interp_nearest(mask, out_h, out_w):
    # mask: (B, 1, Hm, Wm). PyTorch F.interpolate(mode='nearest'):
    # src_idx = floor(dst_idx * in / out)
    _, _, Hm, Wm = mask.shape
    ry = (jnp.arange(out_h) * Hm // out_h).astype(jnp.int32)
    rx = (jnp.arange(out_w) * Wm // out_w).astype(jnp.int32)
    return mask[:, :, ry, :][:, :, :, rx]


def _interp_bilinear(mask, out_h, out_w):
    # mask: (B, 1, Hm, Wm). PyTorch bilinear, align_corners=False:
    # src = (dst + 0.5) * in/out - 0.5, clamped at 0.
    _, _, Hm, Wm = mask.shape
    sy = jnp.clip((jnp.arange(out_h, dtype=jnp.float32) + 0.5) * (Hm / out_h) - 0.5,
                  0.0, None)
    sx = jnp.clip((jnp.arange(out_w, dtype=jnp.float32) + 0.5) * (Wm / out_w) - 0.5,
                  0.0, None)
    y0 = jnp.floor(sy).astype(jnp.int32)
    x0 = jnp.floor(sx).astype(jnp.int32)
    y1 = jnp.minimum(y0 + 1, Hm - 1)
    x1 = jnp.minimum(x0 + 1, Wm - 1)
    wy = (sy - y0.astype(jnp.float32))[:, None]   # (out_h, 1)
    wx = (sx - x0.astype(jnp.float32))[None, :]   # (1, out_w)

    m = mask.astype(jnp.float32)
    m00 = m[:, :, y0, :][:, :, :, x0]
    m01 = m[:, :, y0, :][:, :, :, x1]
    m10 = m[:, :, y1, :][:, :, :, x0]
    m11 = m[:, :, y1, :][:, :, :, x1]
    top = m00 * (1.0 - wx) + m01 * wx
    bot = m10 * (1.0 - wx) + m11 * wx
    return top * (1.0 - wy) + bot * wy


# ------------------------------- forward ------------------------------------- #

def mse_loss_mask(x1, x2, mask=None, mask_type=0, *, tile=None, split=None):
    """JAX/Pallas equivalent of MSELoss_mask.forward."""
    B, C, H, W = x1.shape
    if mask_type == 0:
        # plain mean MSE: no mask stream; den computed analytically.
        num = _plain_sum_sq(x1, x2, tile=tile, split=split)
        den = jnp.float32(B * H * W)
    elif mask_type == 1:
        mi = _interp_nearest(mask[:, None, :, :].astype(jnp.float32), H, W)
        # Binary ignore-mask is exact in bf16 -> halves the third HBM stream.
        m = ((mi != 255.0) & (mi != 0.0)).astype(jnp.bfloat16)
        num, den = _masked_sums(x1, x2, m, tile=tile, split=split)
    else:
        # Bilinear weights stay f32 to remain bit-faithful to PyTorch;
        # switching this cast to bf16 saves another ~1/(2C+1) of HBM bytes.
        m = _interp_bilinear(mask[:, None, :, :].astype(jnp.float32), H, W)
        num, den = _masked_sums(x1, x2, m, tile=tile, split=split)

    # PyTorch uses x1.size()[1] (channels) as "batch_size" divisor — keep it.
    return num / (den * jnp.float32(C))


# -------------------------------- main ---------------------------------------- #

if __name__ == "__main__":

    def _reference(x1, x2, mask1, mask2):
        B, C, H, W = x1.shape
        sq = (x1 - x2) ** 2
        r0 = jnp.mean(sq)
        mi = _interp_nearest(mask1[:, None], H, W)
        mig = ((mi != 255.0) & (mi != 0.0)).astype(jnp.float32)
        r1 = jnp.sum(sq * mig) / (jnp.sum(mig) * C)
        mb = _interp_bilinear(mask2[:, None], H, W)
        r2 = jnp.sum(sq * mb) / (jnp.sum(mb) * C)
        return r0, r1, r2

    def _check(shape, mask_hw, keys, *, tile=None, split=None):
        B, C, H, W = shape
        ka, kb, kc, kd = keys
        x1 = jax.random.normal(ka, shape, jnp.float32)
        x2 = jax.random.normal(kb, shape, jnp.float32)
        mask1 = jnp.take(jnp.array([0.0, 1.0, 255.0], jnp.float32),
                         jax.random.randint(kc, (B,) + mask_hw, 0, 3))
        mask2 = jax.random.uniform(kd, (B,) + mask_hw, dtype=jnp.float32)

        l0 = jax.block_until_ready(
            mse_loss_mask(x1, x2, None, 0, tile=tile, split=split))
        l1 = jax.block_until_ready(
            mse_loss_mask(x1, x2, mask1, 1, tile=tile, split=split))
        l2 = jax.block_until_ready(
            mse_loss_mask(x1, x2, mask2, 2, tile=tile, split=split))

        r0, r1, r2 = _reference(x1, x2, mask1, mask2)
        for got, want in ((l0, r0), (l1, r1), (l2, r2)):
            assert abs(float(got) - float(want)) < 1e-5, (float(got), float(want))

    key = jax.random.PRNGKey(0)
    k1, k2, k3 = jax.random.split(key, 3)

    # Canonical small shapes (single tile per batch element).
    _check((2, 4, 16, 16), (8, 8), jax.random.split(k1, 4))
    # Ragged HW (300, not a multiple of 128): exercises in-kernel lane masking.
    _check((2, 4, 15, 20), (6, 7), jax.random.split(k2, 4))
    # Forced small tile + 2-way HW split (HW=270 -> 3 blocks over 2 parts):
    # exercises clamped block indices, fully-masked tail block and the
    # megacore-split partial outputs.
    _check((1, 4, 9, 30), (5, 5), jax.random.split(k3, 4), tile=128, split=2)

    print("KERNEL_OK")
</pallas_src>

<mosaic_0001>
module attributes {stable_mosaic.version = 11 : i64} {
  func.func @_plain_mse_kernel(%arg0: i32, %arg1: i32, %arg2: i32, %arg3: memref<1x4x256xf32, #tpu.memory_space<vmem>>, %arg4: memref<1x4x256xf32, #tpu.memory_space<vmem>>, %arg5: memref<1x1x8x128xf32, #tpu.memory_space<vmem>>, %arg6: memref<4x256xf32, #tpu.memory_space<vmem>>) attributes {dimension_semantics = [#tpu.dimension_semantics<parallel>, #tpu.dimension_semantics<parallel>, #tpu.dimension_semantics<arbitrary>], iteration_bounds = array<i64: 2, 1, 1>, scalar_prefetch = 0 : i64, scratch_operands = 1 : i64, tpu.core_type = #tpu.core_type<tc>, window_params = [{transform_indices = @transform_0, window_bounds = array<i64: 1, 4, 256>}, {transform_indices = @transform_1, window_bounds = array<i64: 1, 4, 256>}, {transform_indices = @transform_2, window_bounds = array<i64: 1, 1, 8, 128>}]} {
    %c0_i32 = arith.constant 0 : i32
    %0 = arith.cmpi eq, %arg2, %c0_i32 : i32
    %1 = arith.extui %0 : i1 to i32
    %c0_i32_0 = arith.constant 0 : i32
    %2 = arith.cmpi ne, %1, %c0_i32_0 : i32
    scf.if %2 {
      %cst_13 = arith.constant 0.000000e+00 : f32
      %27 = vector.broadcast %cst_13 : f32 to vector<4x256xf32>
      %c0_14 = arith.constant 0 : index
      %c0_15 = arith.constant 0 : index
      %28 = vector.load %arg6[%c0_14, %c0_15] : memref<4x256xf32, #tpu.memory_space<vmem>>, vector<4x256xf32>
      tpu.vector_store %arg6[%c0_14, %c0_15], %27 {strides = array<i32>} : memref<4x256xf32, #tpu.memory_space<vmem>>, vector<4x256xf32>,
    } else {
    }
    %c1_i32 = arith.constant 1 : i32
    %3 = arith.muli %arg1, %c1_i32 : i32
    %4 = arith.addi %3, %arg2 : i32
    %c256_i32 = arith.constant 256 : i32
    %5 = arith.muli %4, %c256_i32 : i32
    %6 = tpu.iota {dimensions = array<i32: 1>} : vector<1x256xi32>
    %7 = vector.broadcast %5 : i32 to vector<1x256xi32>
    %8 = arith.addi %7, %6 : vector<1x256xi32>
    %c256_i32_1 = arith.constant 256 : i32
    %9 = vector.broadcast %c256_i32_1 : i32 to vector<1x256xi32>
    %10 = arith.cmpi slt, %8, %9 : vector<1x256xi32>
    %c0 = arith.constant 0 : index
    %c0_2 = arith.constant 0 : index
    %c0_3 = arith.constant 0 : index
    %11 = vector.load %arg3[%c0, %c0_2, %c0_3] : memref<1x4x256xf32, #tpu.memory_space<vmem>>, vector<1x4x256xf32>
    %12 = vector.shape_cast %11 : vector<1x4x256xf32> to vector<4x256xf32>
    %c0_4 = arith.constant 0 : index
    %c0_5 = arith.constant 0 : index
    %c0_6 = arith.constant 0 : index
    %13 = vector.load %arg4[%c0_4, %c0_5, %c0_6] : memref<1x4x256xf32, #tpu.memory_space<vmem>>, vector<1x4x256xf32>
    %14 = vector.shape_cast %13 : vector<1x4x256xf32> to vector<4x256xf32>
    %15 = arith.subf %12, %14 : vector<4x256xf32>
    %c0_7 = arith.constant 0 : index
    %c0_8 = arith.constant 0 : index
    %16 = vector.load %arg6[%c0_7, %c0_8] : memref<4x256xf32, #tpu.memory_space<vmem>>, vector<4x256xf32>
    %17 = arith.mulf %15, %15 : vector<4x256xf32>
    %cst = arith.constant 0.000000e+00 : f32
    %18 = vector.shape_cast %10 : vector<1x256xi1> to vector<1x256xi1>
    %19 = vector.broadcast %18 : vector<1x256xi1> to vector<4x256xi1>
    %20 = vector.broadcast %cst : f32 to vector<4x256xf32>
    %21 = arith.select %19, %17, %20 : vector<4x256xi1>, vector<4x256xf32>
    %22 = arith.addf %16, %21 : vector<4x256xf32>
    %c0_9 = arith.constant 0 : index
    %c0_10 = arith.constant 0 : index
    %23 = vector.load %arg6[%c0_9, %c0_10] : memref<4x256xf32, #tpu.memory_space<vmem>>, vector<4x256xf32>
    tpu.vector_store %arg6[%c0_9, %c0_10], %22 {strides = array<i32>} : memref<4x256xf32, #tpu.memory_space<vmem>>, vector<4x256xf32>,
    %c0_i32_11 = arith.constant 0 : i32
    %24 = arith.cmpi eq, %arg2, %c0_i32_11 : i32
    %25 = arith.extui %24 : i1 to i32
    %c0_i32_12 = arith.constant 0 : i32
    %26 = arith.cmpi ne, %25, %c0_i32_12 : i32
    scf.if %26 {
      %c0_13 = arith.constant 0 : index
      %c0_14 = arith.constant 0 : index
      %27 = vector.load %arg6[%c0_13, %c0_14] : memref<4x256xf32, #tpu.memory_space<vmem>>, vector<4x256xf32>
      %28 = vector.shape_cast %27 : vector<4x256xf32> to vector<1x4x256xf32>
      %cst_15 = arith.constant dense<0.000000e+00> : vector<1xf32>
      %29 = vector.multi_reduction <add>, %28, %cst_15 [1, 2] : vector<1x4x256xf32> to vector<1xf32>
      %30 = vector.shape_cast %29 : vector<1xf32> to vector<1x1x1xf32>
      %31 = vector.extract %30[0, 0, 0] : f32 from vector<1x1x1xf32>
      %32 = vector.broadcast %31 : f32 to vector<1x1x8x128xf32>
      %c0_16 = arith.constant 0 : index
      %c0_17 = arith.constant 0 : index
      %c0_18 = arith.constant 0 : index
      %c0_19 = arith.constant 0 : index
      %33 = vector.load %arg5[%c0_16, %c0_17, %c0_18, %c0_19] : memref<1x1x8x128xf32, #tpu.memory_space<vmem>>, vector<1x1x8x128xf32>
      tpu.vector_store %arg5[%c0_16, %c0_17, %c0_18, %c0_19], %32 {strides = array<i32>} : memref<1x1x8x128xf32, #tpu.memory_space<vmem>>, vector<1x1x8x128xf32>,
    } else {
    }
    return
  }
  func.func @transform_0(%arg0: i32, %arg1: i32, %arg2: i32) -> (i32, i32, i32) {
    %c1_i32 = arith.constant 1 : i32
    %0 = arith.muli %arg1, %c1_i32 : i32
    %1 = arith.addi %0, %arg2 : i32
    %c0_i32 = arith.constant 0 : i32
    %2 = arith.minsi %1, %c0_i32 : i32
    %c0_i32_0 = arith.constant 0 : i32
    %c0_i32_1 = arith.constant 0 : i32
    return %arg0, %c0_i32_0, %2 : i32, i32, i32
  }
  func.func @transform_1(%arg0: i32, %arg1: i32, %arg2: i32) -> (i32, i32, i32) {
    %c1_i32 = arith.constant 1 : i32
    %0 = arith.muli %arg1, %c1_i32 : i32
    %1 = arith.addi %0, %arg2 : i32
    %c0_i32 = arith.constant 0 : i32
    %2 = arith.minsi %1, %c0_i32 : i32
    %c0_i32_0 = arith.constant 0 : i32
    %c0_i32_1 = arith.constant 0 : i32
    return %arg0, %c0_i32_0, %2 : i32, i32, i32
  }
  func.func @transform_2(%arg0: i32, %arg1: i32, %arg2: i32) -> (i32, i32, i32, i32) {
    %c0_i32 = arith.constant 0 : i32
    %c0_i32_0 = arith.constant 0 : i32
    %c0_i32_1 = arith.constant 0 : i32
    return %arg0, %arg1, %c0_i32, %c0_i32_0 : i32, i32, i32, i32
  }
}

</mosaic_0001>

<llo_original>
// kernel: tpu_custom_call.1
$region0: #{tpu_custom_call.1}
  #allocation0 [shape = 'u32[]', space=smem, size = 0x4, offset = 0x4, fixed_abs, tag = 'smem constant byte address 0x4 - core index']
  #allocation1 [shape = 'u32[144,128]{1,0:T(1,128)}', space=vmem, size = 0x12000, scoped, tag = 'internal scratch']
  #allocation2 [shape = 'f32[4,256]{1,0:T(4,128)}', space=vmem, size = 0x1000, scoped, tag = 'scratch operand']
  %s0 = inlined_call_operand.hbm [shape: f32[2,4,256], index: 0, kind: input, shape index: {}]
  %s1 = inlined_call_operand.hbm [shape: f32[2,4,256], index: 1, kind: input, shape index: {}]
  %s2 = inlined_call_operand.hbm [shape: f32[2,1,8,128], index: 2, kind: output, shape index: {}]
  %s3 = sld [smem:[#allocation0]]
  $region57: #{tpu_custom_call.1} parent=0
    _
  %s5 = ssub.s32 1, %s3
  %s6 = scalar_select 0, %s5, %s3
  $region1: #{tpu_custom_call.1} parent=0
    #allocation3 [shape = 'u8[8192]{0}', space=vmem, size = 0x2000, scoped, tag = 'input window, operand 0']
    #allocation4 [shape = 's32[2]{0}', space=sflag, size = 0x8, scoped, tag = 'scoped memory for tpu_custom_call.1']
    #allocation5 [shape = 's32[2]{0}', space=sflag, size = 0x8, scoped, tag = 'scoped memory for tpu_custom_call.1']
    #allocation6 [shape = 'u8[8192]{0}', space=vmem, size = 0x2000, scoped, tag = 'input window, operand 1']
    #allocation7 [shape = 's32[2]{0}', space=sflag, size = 0x8, scoped, tag = 'scoped memory for tpu_custom_call.1']
    #allocation8 [shape = 'u8[8192]{0}', space=vmem, size = 0x2000, scoped, tag = 'output window, operand 0']
    %7 = vsyncpa [#allocation4], 0
    %s8 = scalar_lea.sflag [#allocation4], 1
    %9 = vsyncpa %s8, 0
    %10 = vsyncpa [#allocation7], 0
    %s11 = scalar_lea.sflag [#allocation7], 1
    %12 = vsyncpa %s11, 0
    %13 = vsyncpa [#allocation5], 0
    %s14 = scalar_lea.sflag [#allocation5], 1
    %15 = vsyncpa %s14, 0
    loop: start=0, step=1, limit=4
    $region2: #{tpu_custom_call.1} parent=1 // loop_pre_header
      _
    $region3: #{tpu_custom_call.1} parent=1 // loop_header
      %s17 = sphi 0, %s21
      %p18 = scmp.ge.s32.totalorder %s17, 4
      %s24 = sphi 0, %s43
      %s25 = sphi 0, %s39
      %s26 = sphi 0, %s35
      %s27 = sphi 0, %s24
      %s28 = sphi 0, %s25
      %s29 = sphi 0, %s26
      %s30 = sphi 0, %s27
      %s31 = sphi 0, %s28
      %s32 = sphi 0, %s29
      %s54 = sphi 0, %s56
      %s57 = sphi 0, %s54
      %s58 = sphi 0, %s57
      %s74 = sphi 0, %s58
      %s88 = sphi 0, %s90
      %s91 = sphi 0, %s88
      %s92 = sphi 0, %s91
      %s108 = sphi 0, %s92
      %s116 = sphi 0, %s118
      %s119 = sphi 0, %s116
      %s120 = sphi 0, %s119
      %s136 = sphi 0, %s120
    $region4: #{tpu_custom_call.1} parent=1 // loop_header_branch
      %20 = sbr.rel (%p18) target = $region8
    $region5: #{tpu_custom_call.1} parent=1 // loop_body
      %s22 = ssub.s32 %s17, 1
      %s23 = ssub.s32 %s17, 2
      %s33 = sadd.s32 1, %s26
      %p34 = scmp.ge.s32.totalorder %s33, 1
      %s35 = scalar_select %p34, 0, %s33
      %s36 = sadd.s32 1, %s25
      %s37 = scalar_select %p34, %s36, %s25
      %p38 = scmp.ge.s32.totalorder %s37, 1
      %s39 = scalar_select %p38, 0, %s37
      %s40 = sadd.s32 1, %s24
      %s41 = scalar_select %p38, %s40, %s24
      %p42 = scmp.ge.s32.totalorder %s41, 2
      %s43 = scalar_select %p42, 0, %s41
      %s44 = sadd.s32 %s25, %s26
      %p45 = scmp.lt.s32.totalorder %s44, 0
      %s46 = scalar_select %p45, %s44, 0
      %s47 = sadd.s32 %s39, %s35
      %p48 = scmp.lt.s32.totalorder %s47, 0
      %s49 = scalar_select %p48, %s47, 0
      %s50 = ssub.s32 %s24, %s43
      %s51 = ssub.s32 %s46, %s49
      %s52 = sor.u32 %s50, %s51
      %p53 = scmp.eq.s32.totalorder %s52, 0
      %s55 = sadd.s32 %s54, 1
      %s56 = scalar_select %p53, %s54, %s55
      %p59 = pneg %p53
      %p60 = scmp.eq.s32.totalorder %s17, 1
      %p61 = por %p59, %p60
      %p62 = scmp.ne.s32.totalorder %s54, %s57
      %p63 = scmp.eq.s32.totalorder %s17, 0
      %p64 = por %p62, %p63
      %p65 = scmp.ne.s32.totalorder %s54, %s57
      %p66 = scmp.eq.s32.totalorder %s22, 1
      %p67 = por %p65, %p66
      %p68 = scmp.ne.s32.totalorder %s57, %s58
      %p69 = scmp.eq.s32.totalorder %s22, 0
      %p70 = por %p68, %p69
      %p71 = scmp.ne.s32.totalorder %s57, %s58
      %p72 = scmp.eq.s32.totalorder %s23, 1
      %p73 = por %p71, %p72
      %p75 = scmp.ne.s32.totalorder %s58, %s74
      %p76 = scmp.eq.s32.totalorder %s23, 0
      %p77 = por %p75, %p76
      %s78 = sadd.s32 %s25, %s26
      %p79 = scmp.lt.s32.totalorder %s78, 0
      %s80 = scalar_select %p79, %s78, 0
      %s81 = sadd.s32 %s39, %s35
      %p82 = scmp.lt.s32.totalorder %s81, 0
      %s83 = scalar_select %p82, %s81, 0
      %s84 = ssub.s32 %s24, %s43
      %s85 = ssub.s32 %s80, %s83
      %s86 = sor.u32 %s84, %s85
      %p87 = scmp.eq.s32.totalorder %s86, 0
      %s89 = sadd.s32 %s88, 1
      %s90 = scalar_select %p87, %s88, %s89
      %p93 = pneg %p87
      %p94 = scmp.eq.s32.totalorder %s17, 1
      %p95 = por %p93, %p94
      %p96 = scmp.ne.s32.totalorder %s88, %s91
      %p97 = scmp.eq.s32.totalorder %s17, 0
      %p98 = por %p96, %p97
      %p99 = scmp.ne.s32.totalorder %s88, %s91
      %p100 = scmp.eq.s32.totalorder %s22, 1
      %p101 = por %p99, %p100
      %p102 = scmp.ne.s32.totalorder %s91, %s92
      %p103 = scmp.eq.s32.totalorder %s22, 0
      %p104 = por %p102, %p103
      %p105 = scmp.ne.s32.totalorder %s91, %s92
      %p106 = scmp.eq.s32.totalorder %s23, 1
      %p107 = por %p105, %p106
      %p109 = scmp.ne.s32.totalorder %s92, %s108
      %p110 = scmp.eq.s32.totalorder %s23, 0
      %p111 = por %p109, %p110
      %s112 = ssub.s32 %s24, %s43
      %s113 = ssub.s32 %s25, %s39
      %s114 = sor.u32 %s112, %s113
      %p115 = scmp.eq.s32.totalorder %s114, 0
      %s117 = sadd.s32 %s116, 1
      %s118 = scalar_select %p115, %s116, %s117
      %p121 = pneg %p115
      %p122 = scmp.eq.s32.totalorder %s17, 1
      %p123 = por %p121, %p122
      %p124 = scmp.ne.s32.totalorder %s116, %s119
      %p125 = scmp.eq.s32.totalorder %s17, 0
      %p126 = por %p124, %p125
      %p127 = scmp.ne.s32.totalorder %s116, %s119
      %p128 = scmp.eq.s32.totalorder %s22, 1
      %p129 = por %p127, %p128
      %p130 = scmp.ne.s32.totalorder %s119, %s120
      %p131 = scmp.eq.s32.totalorder %s22, 0
      %p132 = por %p130, %p131
      %p133 = scmp.ne.s32.totalorder %s119, %s120
      %p134 = scmp.eq.s32.totalorder %s23, 1
      %p135 = por %p133, %p134
      %p137 = scmp.ne.s32.totalorder %s120, %s136
      %p138 = scmp.eq.s32.totalorder %s23, 0
      %p139 = por %p137, %p138
      %p140 = scmp.le.s32.totalorder 1, %s17
      %p141 = scmp.lt.s32.totalorder %s17, 3
      %p142 = pnand %p140, %p141
      %p143 = pneg %p142
      // Predicated region
      $region9: #{tpu_custom_call.1} parent=5 // pred_check
        _
      $region10: #{tpu_custom_call.1} parent=5 // pred_check_branch
        %145 = sbr.rel (%p142) target = $region12
      $region11: #{tpu_custom_call.1} parent=5 // pred_region
        %s146 = ssub.s32 %s17, 1
      $region12: #{tpu_custom_call.1} parent=5 // pred_fallthru
        _
      %p147 = scmp.lt.s32.totalorder %s17, 2
      // Predicated region
      $region13: #{tpu_custom_call.1} parent=5 // pred_check
        %p148 = pneg %p147
      $region14: #{tpu_custom_call.1} parent=5 // pred_check_branch
        %150 = sbr.rel (%p148) target = $region16
      $region15: #{tpu_custom_call.1} parent=5 // pred_region
        // Predicated region
        $region17: #{tpu_custom_call.1} parent=15 // pred_check
          %p151 = pneg %p64
        $region18: #{tpu_custom_call.1} parent=15 // pred_check_branch
          %153 = sbr.rel (%p151) target = $region20
        $region19: #{tpu_custom_call.1} parent=15 // pred_region
          %s154 = sand.u32 %s54, 1
          %s155 = scalar_lea.sflag [#allocation4], %s154
          %s156 = sand.u32 %s54, 1
          %s157 = smul.addr %s156, 8
          %s158 = scalar_lea.vmem [#allocation3], %s157
          %s159 = sadd.s32 %s25, %s26
          %p160 = scmp.lt.s32.totalorder %s159, 0
          %s161 = scalar_select %p160, %s159, 0
          %s162 = smul.u32 2, %s161
          %s164 = ssub.s32 128, 128
          %165 = vsyncadd %s155, %s164
          %s166 = smul.addr %s24, 2
          %s167 = sadd.s32 %s162, %s166
          %s168 = smul.addr %s167, 64
          %s169 = scalar_lea.hbm %s0, %s168
          %s171 = sshll.u32 %s158, 4
          %s172 = int_to_ptr.vmem [resolvable:$true] %s171
          %174 = dma.hbm_to_vmem [thread:$0]  %s169, 128, %s172, %s155
        $region20: #{tpu_custom_call.1} parent=15 // pred_fallthru
          _
        // Predicated region
        $region21: #{tpu_custom_call.1} parent=15 // pred_check
          %p175 = pneg %p98
        $region22: #{tpu_custom_call.1} parent=15 // pred_check_branch
          %177 = sbr.rel (%p175) target = $region24
        $region23: #{tpu_custom_call.1} parent=15 // pred_region
          %s178 = sand.u32 %s88, 1
          %s179 = scalar_lea.sflag [#allocation7], %s178
          %s180 = sand.u32 %s88, 1
          %s181 = smul.addr %s180, 8
          %s182 = scalar_lea.vmem [#allocation6], %s181
          %s183 = sadd.s32 %s25, %s26
          %p184 = scmp.lt.s32.totalorder %s183, 0
          %s185 = scalar_select %p184, %s183, 0
          %s186 = smul.u32 2, %s185
          %s188 = ssub.s32 128, 128
          %189 = vsyncadd %s179, %s188
          %s190 = smul.addr %s24, 2
          %s191 = sadd.s32 %s186, %s190
          %s192 = smul.addr %s191, 64
          %s193 = scalar_lea.hbm %s1, %s192
          %s195 = sshll.u32 %s182, 4
          %s196 = int_to_ptr.vmem [resolvable:$true] %s195
          %198 = dma.hbm_to_vmem [thread:$0]  %s193, 128, %s196, %s179
        $region24: #{tpu_custom_call.1} parent=15 // pred_fallthru
          _
      $region16: #{tpu_custom_call.1} parent=5 // pred_fallthru
        _
      %p199 = scmp.le.s32.totalorder 1, %s17
      %p200 = scmp.lt.s32.totalorder %s17, 3
      %p201 = pnand %p199, %p200
      %p202 = pneg %p201
      // Predicated region
      $region25: #{tpu_custom_call.1} parent=5 // pred_check
        _
      $region26: #{tpu_custom_call.1} parent=5 // pred_check_branch
        %204 = sbr.rel (%p201) target = $region28
      $region27: #{tpu_custom_call.1} parent=5 // pred_region
        %s205 = ssub.s32 %s17, 1
        %s206 = sand.u32 %s57, 1
        %s207 = scalar_lea.sflag [#allocation4], %s206
        %s208 = sand.u32 %s57, 1
        %s209 = smul.addr %s208, 8
        %s210 = scalar_lea.vmem [#allocation3], %s209
        // Predicated region
        $region29: #{tpu_custom_call.1} parent=27 // pred_check
          %p211 = pneg %p70
        $region30: #{tpu_custom_call.1} parent=27 // pred_check_branch
          %213 = sbr.rel (%p211) target = $region32
        $region31: #{tpu_custom_call.1} parent=27 // pred_region
          %214 = dma.done %s207, 128
        $region32: #{tpu_custom_call.1} parent=27 // pred_fallthru
          _
        %s215 = sand.u32 %s91, 1
        %s216 = scalar_lea.sflag [#allocation7], %s215
        %s217 = sand.u32 %s91, 1
        %s218 = smul.addr %s217, 8
        %s219 = scalar_lea.vmem [#allocation6], %s218
        // Predicated region
        $region33: #{tpu_custom_call.1} parent=27 // pred_check
          %p220 = pneg %p104
        $region34: #{tpu_custom_call.1} parent=27 // pred_check_branch
          %222 = sbr.rel (%p220) target = $region36
        $region35: #{tpu_custom_call.1} parent=27 // pred_region
          %223 = dma.done %s216, 128
        $region36: #{tpu_custom_call.1} parent=27 // pred_fallthru
          _
        %s224 = sand.u32 %s57, 1
        %s225 = scalar_lea.sflag [#allocation4], %s224
        %s226 = sand.u32 %s57, 1
        %s227 = smul.addr %s226, 8
        %s228 = scalar_lea.vmem [#allocation3], %s227
        %p229 = pneg %p70
        %p230 = pneg %p67
        %s231 = sand.u32 %s91, 1
        %s232 = scalar_lea.sflag [#allocation7], %s231
        %s233 = sand.u32 %s91, 1
        %s234 = smul.addr %s233, 8
        %s235 = scalar_lea.vmem [#allocation6], %s234
        %p236 = pneg %p104
        %p237 = pneg %p101
        %p238 = pneg %p132
        %p239 = pneg %p129
        %s240 = sand.u32 %s119, 1
        %s241 = scalar_lea.sflag [#allocation5], %s240
        %s242 = sand.u32 %s119, 1
        %s243 = smul.addr %s242, 8
        %s244 = scalar_lea.vmem [#allocation8], %s243
        %s245 = sadd.s32 %s28, %s29
        %p246 = scmp.lt.s32.totalorder %s245, 0
        %s247 = scalar_select %p246, %s245, 0
        %s248 = smul.u32 2, %s247
        %s249 = sadd.s32 %s28, %s29
        %p250 = scmp.lt.s32.totalorder %s249, 0
        %s251 = scalar_select %p250, %s249, 0
        %s252 = smul.u32 2, %s251
        %p253 = scmp.eq.s32.totalorder %s29, 0
        // Predicated region
        $region37: #{tpu_custom_call.1} parent=27 // pred_check
          %p254 = pneg %p253
        $region38: #{tpu_custom_call.1} parent=27 // pred_check_branch
          %256 = sbr.rel (%p254) target = $region40
        $region39: #{tpu_custom_call.1} parent=27 // pred_region
          %257 = vst [vmem:[#allocation2] sm:$0xff] 0.0
        $region40: #{tpu_custom_call.1} parent=27 // pred_fallthru
          _
        %s258 = sadd.s32 %s28, %s29
        %s259 = smul.u32 %s258, 256
        %v260 = vlaneseq
        %v261 = vand.u32 %v260, 127
        %v262 = vadd.s32 %v261, 128
        %v263 = vstv %s259
        %v264 = vadd.s32 %v263, %v261
        %v265 = vadd.s32 %v263, %v262
        %vm266 = vcmp.lt.s32.totalorder %v264, 256
        %vm267 = vcmp.lt.s32.totalorder %v265, 256
        %v268 = vld [vmem:[%s210] sm:$0xff]
        %v269 = vld [vmem:[%s219] sm:$0xff]
        %v270 = vsub.f32 %v268, %v269
        %v271 = vld [vmem:[#allocation2] sm:$0xff]
        %v272 = vmul.f32 %v270, %v270
        %v273 = vsel %vm266, 1, 0
        %v274 = vsel %vm267, 1, 0
        %vm275 = vcmp.eq.s32.totalorder %v273, 1
        %vm276 = vcmp.eq.s32.totalorder %v274, 1
        %v278 = vcombine.high %v272, %v272
        %v280 = vsel %vm275, %v272, 0.0
        %v281 = vsel %vm276, %v278, 0.0
        %v284 = vcombine.low %v280, %v281
        %v286 = vadd.f32 %v271, %v284
        %287 = vst [vmem:[#allocation2] sm:$0xff] %v286
        // Predicated region
        $region41: #{tpu_custom_call.1} parent=27 // pred_check
          %p288 = pneg %p253
        $region42: #{tpu_custom_call.1} parent=27 // pred_check_branch
          %290 = sbr.rel (%p288) target = $region44
        $region43: #{tpu_custom_call.1} parent=27 // pred_region
          %v291 = vld [vmem:[#allocation2] sm:$0xff]
          %v293 = vcombine.high %v291, %v291
          %vm295 = vcmask 1043456
          %v296 = vsel %vm295, %v291, 0.0
          %v297 = vsel %vm295, %v293, 0.0
          %v298 = vadd.f32 %v296, %v297
          %299 = vadd.xlane.f32.xlu0 %v298
          %v300 = vpop.xlane.xlu0 %299
          %v301 = vrot.slane %v300, 4
          %v302 = vadd.f32 %v300, %v301
          %v303 = vrot.slane %v302, 2
          %v304 = vadd.f32 %v302, %v303
          %v305 = vrot.slane %v304, 1
          %v306 = vadd.f32 %v304, %v305
          %s307 = vtos %v306
          %v308 = vstv %s307
          %309 = vst [vmem:[%s244] sm:$0xff] %v308
        $region44: #{tpu_custom_call.1} parent=27 // pred_fallthru
          _
        %s310 = sand.u32 %s119, 1
        %s311 = scalar_lea.sflag [#allocation5], %s310
        %s312 = sand.u32 %s119, 1
        %s313 = smul.addr %s312, 8
        %s314 = scalar_lea.vmem [#allocation8], %s313
        // Predicated region
        $region45: #{tpu_custom_call.1} parent=27 // pred_check
          %p315 = pneg %p129
        $region46: #{tpu_custom_call.1} parent=27 // pred_check_branch
          %317 = sbr.rel (%p315) target = $region48
        $region47: #{tpu_custom_call.1} parent=27 // pred_region
          %s319 = ssub.s32 128, 128
          %320 = vsyncadd %s311, %s319
          %s321 = sadd.s32 %s28, %s27
          %s322 = smul.addr %s321, 128
          %s323 = scalar_lea.hbm %s2, %s322
          %s325 = sshll.u32 %s314, 4
          %s326 = int_to_ptr.vmem [resolvable:$true] %s325
          %328 = dma.vmem_to_hbm [thread:$0]  %s326, 128, %s323, %s311
        $region48: #{tpu_custom_call.1} parent=27 // pred_fallthru
          _
      $region28: #{tpu_custom_call.1} parent=5 // pred_fallthru
        _
      %p329 = scmp.le.s32.totalorder 2, %s17
      // Predicated region
      $region49: #{tpu_custom_call.1} parent=5 // pred_check
        %p330 = pneg %p329
      $region50: #{tpu_custom_call.1} parent=5 // pred_check_branch
        %332 = sbr.rel (%p330) target = $region52
      $region51: #{tpu_custom_call.1} parent=5 // pred_region
        %s333 = ssub.s32 %s17, 2
        // Predicated region
        $region53: #{tpu_custom_call.1} parent=51 // pred_check
          %p334 = pneg %p135
        $region54: #{tpu_custom_call.1} parent=51 // pred_check_branch
          %336 = sbr.rel (%p334) target = $region56
        $region55: #{tpu_custom_call.1} parent=51 // pred_region
          %s337 = sand.u32 %s120, 1
          %s338 = scalar_lea.sflag [#allocation5], %s337
          %s339 = sand.u32 %s120, 1
          %s340 = smul.addr %s339, 8
          %s341 = scalar_lea.vmem [#allocation8], %s340
          %342 = dma.done %s338, 128
        $region56: #{tpu_custom_call.1} parent=51 // pred_fallthru
          _
      $region52: #{tpu_custom_call.1} parent=5 // pred_fallthru
        _
    $region6: #{tpu_custom_call.1} parent=1 // loop_footer
      %s21 = sadd.s32 1, %s17
    $region7: #{tpu_custom_call.1} parent=1 // loop_footer_branch
      %16 = sbr.rel target = $region3
    $region8: #{tpu_custom_call.1} parent=1 // loop_exit
      _
    %343 = vsyncpa [#allocation4], 1
    %s344 = scalar_lea.sflag [#allocation4], 1
    %345 = vsyncpa %s344, 1
    %346 = vsyncpa [#allocation7], 1
    %s347 = scalar_lea.sflag [#allocation7], 1
    %348 = vsyncpa %s347, 1
    %349 = vsyncpa [#allocation5], 1
    %s350 = scalar_lea.sflag [#allocation5], 1
    %351 = vsyncpa %s350, 1

</llo_original>
